<compile_context>
chip_gen: v7x
topology: tpu7x:2x2x1
jax: 0.10.0
libtpu: 0.0.40
codegen_flags: <defaults>
</compile_context>

<pallas_src>
import functools

import jax
import jax.numpy as jnp
from jax import lax
from jax.experimental import pallas as pl
from jax.experimental.pallas import tpu as pltpu


def _round_up(x, m):
    return (x + m - 1) // m * m


# ----------------------------------------------------------------------------
# Pallas kernel 1: single-K-step matmul with fused BN (scale/shift),
# optional residual add, optional ReLU.  bf16 MXU inputs, f32 epilogue math.
# ----------------------------------------------------------------------------
def _matmul_bn_kernel(a_ref, b_ref, scale_ref, shift_ref, o_ref, *, relu):
    acc = jnp.dot(a_ref[...], b_ref[...], preferred_element_type=jnp.float32)
    y = acc * scale_ref[...] + shift_ref[...]
    if relu:
        y = jnp.maximum(y, 0.0)
    o_ref[...] = y.astype(o_ref.dtype)


def _matmul_bn_res_kernel(a_ref, b_ref, scale_ref, shift_ref, res_ref, o_ref, *, relu):
    acc = jnp.dot(a_ref[...], b_ref[...], preferred_element_type=jnp.float32)
    y = acc * scale_ref[...] + shift_ref[...] + res_ref[...].astype(jnp.float32)
    if relu:
        y = jnp.maximum(y, 0.0)
    o_ref[...] = y.astype(o_ref.dtype)


def matmul_bn_act(a, b_p, scale_p, shift_p, relu, residual=None):
    """out = act((a @ b_p) * scale + shift [+ residual]).

    b_p / scale_p / shift_p are already padded to (Kp, Np) / (1, Np) and b_p is
    bf16 (done once at parameter-build time).  `a` is (M, K) with K <= Kp and is
    cast to bf16 / padded here.  Returns (M, Np) bf16.
    """
    M, K = a.shape
    Kp, Np = b_p.shape

    # Right-size the M tile to the real M (deep layers: M = 2..32); pad M to a
    # multiple of 16 so bf16 sublane packing is happy.
    tm = min(128, _round_up(M, 16))
    Mp = _round_up(M, tm)
    # 256-wide N tiles feed the 256x256 MXU on v6e/v7x; fall back to 128.
    tn = 256 if Np % 256 == 0 else 128

    a_p = jnp.pad(a.astype(jnp.bfloat16), ((0, Mp - M), (0, Kp - K)))

    in_specs = [
        pl.BlockSpec((tm, Kp), lambda i, j: (i, 0)),   # A: full K in one step
        pl.BlockSpec((Kp, tn), lambda i, j: (0, j)),   # B (pre-padded bf16 weights)
        pl.BlockSpec((1, tn), lambda i, j: (0, j)),    # BN scale
        pl.BlockSpec((1, tn), lambda i, j: (0, j)),    # BN shift
    ]
    args = [a_p, b_p, scale_p, shift_p]

    if residual is None:
        kernel = functools.partial(_matmul_bn_kernel, relu=relu)
    else:
        r_p = jnp.pad(residual.astype(jnp.bfloat16),
                      ((0, Mp - residual.shape[0]), (0, Np - residual.shape[1])))
        in_specs.append(pl.BlockSpec((tm, tn), lambda i, j: (i, j)))
        args.append(r_p)
        kernel = functools.partial(_matmul_bn_res_kernel, relu=relu)

    out = pl.pallas_call(
        kernel,
        out_shape=jax.ShapeDtypeStruct((Mp, Np), jnp.bfloat16),
        grid_spec=pltpu.PrefetchScalarGridSpec(
            num_scalar_prefetch=0,
            grid=(Mp // tm, Np // tn),
            in_specs=in_specs,
            out_specs=pl.BlockSpec((tm, tn), lambda i, j: (i, j)),
        ),
        compiler_params=pltpu.CompilerParams(
            dimension_semantics=("parallel", "parallel")),
    )(*args)
    return out[:M, :]


# ----------------------------------------------------------------------------
# Pallas kernel 2: head = global average pool -> layer_norm (no affine) -> Linear
# ----------------------------------------------------------------------------
def _head_kernel(x_ref, w_ref, b_ref, o_ref):
    x = x_ref[...].astype(jnp.float32)              # (N, HW, C)
    pooled = jnp.mean(x, axis=1)                    # adaptive avg pool -> (N, C)
    mu = jnp.mean(pooled, axis=-1, keepdims=True)
    var = jnp.mean(jnp.square(pooled - mu), axis=-1, keepdims=True)
    xn = (pooled - mu) * lax.rsqrt(var + 1e-5)      # F.layer_norm (eps=1e-5, no affine)
    y = jnp.dot(xn, w_ref[...], preferred_element_type=jnp.float32) + b_ref[...]
    o_ref[...] = y.astype(o_ref.dtype)


def head(x, w, b):
    n, hw, c = x.shape
    f = w.shape[1]
    return pl.pallas_call(
        _head_kernel,
        out_shape=jax.ShapeDtypeStruct((n, f), jnp.float32),
        grid=(1,),
        in_specs=[
            pl.BlockSpec((n, hw, c), lambda i: (0, 0, 0)),
            pl.BlockSpec((c, f), lambda i: (0, 0)),
            pl.BlockSpec((1, f), lambda i: (0, 0)),
        ],
        out_specs=pl.BlockSpec((n, f), lambda i: (0, 0)),
    )(x, w, b)


# ----------------------------------------------------------------------------
# Plain-JAX glue: im2col, maxpool
# ----------------------------------------------------------------------------
def im2col(x, kh, kw, stride, pad):
    """x: NHWC -> patches (N*OH*OW, KH*KW*C), plus (OH, OW)."""
    if pad:
        x = jnp.pad(x, ((0, 0), (pad, pad), (pad, pad), (0, 0)))
    n, h, w, c = x.shape
    oh = (h - kh) // stride + 1
    ow = (w - kw) // stride + 1
    if kh == 1 and kw == 1:
        patches = x[:, ::stride, ::stride, :]
        return patches.reshape(n * oh * ow, c), oh, ow
    # TODO(synk): 3x3 patch gather still materializes ~9x activation bytes in HBM;
    # an in-kernel gather (kh*kw reduction grid axis over the padded NHWC tensor)
    # would remove that traffic.
    cols = []
    for i in range(kh):
        for j in range(kw):
            cols.append(x[:, i:i + stride * oh:stride, j:j + stride * ow:stride, :])
    patches = jnp.concatenate(cols, axis=-1)        # (N, OH, OW, KH*KW*C)
    return patches.reshape(n * oh * ow, kh * kw * c), oh, ow


def maxpool_3x3_s2(x):
    # TODO(synk): 3x3/s2 max-pool kept as plain-JAX reduce_window (minor op, not the hot path).
    init = jnp.array(-jnp.inf, dtype=x.dtype)
    return lax.reduce_window(
        x, init, lax.max,
        window_dimensions=(1, 3, 3, 1), window_strides=(1, 2, 2, 1),
        padding=[(0, 0), (1, 1), (1, 1), (0, 0)],
    )


# ----------------------------------------------------------------------------
# Deterministic synthetic parameters (ResNet-50 topology)
# ----------------------------------------------------------------------------
class KeyGen:
    def __init__(self, key):
        self.key = key

    def __call__(self):
        self.key, sub = jax.random.split(self.key)
        return sub


def conv_bn(kg, kh, kw, ic, oc):
    w = jax.random.normal(kg(), (kh, kw, ic, oc), jnp.float32) * (2.0 / (kh * kw * ic)) ** 0.5
    gamma = 1.0 + 0.1 * jax.random.normal(kg(), (oc,), jnp.float32)
    beta = 0.1 * jax.random.normal(kg(), (oc,), jnp.float32)
    mean = 0.1 * jax.random.normal(kg(), (oc,), jnp.float32)
    var = 1.0 + 0.1 * jnp.abs(jax.random.normal(kg(), (oc,), jnp.float32))
    scale = gamma / jnp.sqrt(var + 1e-5)            # inference-mode BN folded
    shift = beta - mean * scale
    # Pre-pad + pre-cast once (not per forward): weights -> bf16 (MXU input dtype),
    # scale/shift kept f32 (epilogue math stays f32; v5e has no bf16 VALU).
    K = kh * kw * ic
    Kp, Np = _round_up(K, 128), _round_up(oc, 128)
    w_p = jnp.pad(w.reshape(K, oc), ((0, Kp - K), (0, Np - oc))).astype(jnp.bfloat16)
    scale_p = jnp.pad(scale.reshape(1, oc), ((0, 0), (0, Np - oc)))
    shift_p = jnp.pad(shift.reshape(1, oc), ((0, 0), (0, Np - oc)))
    return {"w": w_p, "scale": scale_p, "shift": shift_p,
            "kh": kh, "kw": kw, "oc": oc}


BLOCK_CONFIG = [(64, 3, 1), (128, 4, 2), (256, 6, 2), (512, 3, 2)]  # (planes, n_blocks, stride)


def build_params(key, feature_dim):
    kg = KeyGen(key)
    params = {"stem": conv_bn(kg, 7, 7, 3, 64)}
    in_ch = 64
    layers = []
    for planes, nblocks, stride in BLOCK_CONFIG:
        blocks = []
        for b in range(nblocks):
            s = stride if b == 0 else 1
            blk = {
                "conv1": conv_bn(kg, 1, 1, in_ch, planes),
                "conv2": conv_bn(kg, 3, 3, planes, planes),
                "conv3": conv_bn(kg, 1, 1, planes, planes * 4),
                "stride": s,
            }
            if b == 0:
                blk["down"] = conv_bn(kg, 1, 1, in_ch, planes * 4)
            blocks.append(blk)
            in_ch = planes * 4
        layers.append(blocks)
    params["layers"] = layers
    params["w_ref"] = jax.random.normal(kg(), (2048, feature_dim), jnp.float32) / (2048.0 ** 0.5)
    params["b_ref"] = 0.01 * jax.random.normal(kg(), (1, feature_dim), jnp.float32)
    return params


# ----------------------------------------------------------------------------
# Forward pass
# ----------------------------------------------------------------------------
def conv_bn_apply(x, layer, stride, pad, relu, residual=None):
    kh, kw = layer["kh"], layer["kw"]
    n = x.shape[0]
    patches, oh, ow = im2col(x, kh, kw, stride, pad)
    out = matmul_bn_act(patches, layer["w"], layer["scale"], layer["shift"],
                        relu, residual=residual)
    return out[:, :layer["oc"]].reshape(n, oh, ow, layer["oc"])


def bottleneck(x, blk):
    s = blk["stride"]
    if "down" in blk:
        identity = conv_bn_apply(x, blk["down"], stride=s, pad=0, relu=False)
    else:
        identity = x
    out = conv_bn_apply(x, blk["conv1"], stride=1, pad=0, relu=True)
    out = conv_bn_apply(out, blk["conv2"], stride=s, pad=1, relu=True)
    ni, hi, wi, ci = identity.shape
    res2d = identity.reshape(ni * hi * wi, ci)
    # residual add + ReLU fused into the conv3 matmul epilogue (no separate kernel)
    out = conv_bn_apply(out, blk["conv3"], stride=1, pad=0, relu=True, residual=res2d)
    return out


def convnet_forward(params, x_nchw):
    x = jnp.transpose(x_nchw, (0, 2, 3, 1)).astype(jnp.bfloat16)   # NCHW -> NHWC, bf16 activations
    x = conv_bn_apply(x, params["stem"], stride=2, pad=3, relu=True)
    x = maxpool_3x3_s2(x)
    for blocks in params["layers"]:
        for blk in blocks:
            x = bottleneck(x, blk)
    n, h, w, c = x.shape                                           # c == 2048
    # avgpool -> flatten -> layer_norm -> Linear (matches ResNet50 avgpool + ConvNet head)
    return head(x.reshape(n, h * w, c), params["w_ref"], params["b_ref"])


if __name__ == "__main__":
    key = jax.random.PRNGKey(0)
    pkey, xkey = jax.random.split(key)
    feature_dim = 128
    params = build_params(pkey, feature_dim)

    # small input consistent with the module: batch=2, RGB, 32x32 spatial
    x = jax.random.normal(xkey, (2, 3, 32, 32), jnp.float32)

    out = convnet_forward(params, x)
    out = jax.block_until_ready(out)

    assert out.shape == (2, feature_dim), out.shape
    assert bool(jnp.all(jnp.isfinite(out)))
    print("KERNEL_OK")
</pallas_src>

<mosaic_0001>
module attributes {stable_mosaic.version = 11 : i64} {
  func.func @_matmul_bn_kernel(%arg0: i32, %arg1: i32, %arg2: memref<128x256xbf16, #tpu.memory_space<vmem>>, %arg3: memref<256x128xbf16, #tpu.memory_space<vmem>>, %arg4: memref<1x128xf32, #tpu.memory_space<vmem>>, %arg5: memref<1x128xf32, #tpu.memory_space<vmem>>, %arg6: memref<128x128xbf16, #tpu.memory_space<vmem>>) attributes {dimension_semantics = [#tpu.dimension_semantics<parallel>, #tpu.dimension_semantics<parallel>], iteration_bounds = array<i64: 4, 1>, scalar_prefetch = 0 : i64, scratch_operands = 0 : i64, tpu.core_type = #tpu.core_type<tc>, window_params = [{transform_indices = @transform_0, window_bounds = array<i64: 128, 256>}, {transform_indices = @transform_1, window_bounds = array<i64: 256, 128>}, {transform_indices = @transform_2, window_bounds = array<i64: 1, 128>}, {transform_indices = @transform_3, window_bounds = array<i64: 1, 128>}, {transform_indices = @transform_4, window_bounds = array<i64: 128, 128>}]} {
    %c0 = arith.constant 0 : index
    %c0_0 = arith.constant 0 : index
    %0 = vector.load %arg2[%c0, %c0_0] : memref<128x256xbf16, #tpu.memory_space<vmem>>, vector<128x256xbf16>
    %c0_1 = arith.constant 0 : index
    %c0_2 = arith.constant 0 : index
    %1 = vector.load %arg3[%c0_1, %c0_2] : memref<256x128xbf16, #tpu.memory_space<vmem>>, vector<256x128xbf16>
    %cst = arith.constant dense<0.000000e+00> : vector<128x128xf32>
    %2 = tpu.matmul %0, %1, %cst {dimension_numbers = #tpu.dot_dimension_numbers<[1], [0], [0], [1], [0, 0, 1, 1], [], []>} : vector<128x256xbf16>, vector<256x128xbf16>, vector<128x128xf32> -> vector<128x128xf32>
    %c0_3 = arith.constant 0 : index
    %c0_4 = arith.constant 0 : index
    %3 = vector.load %arg4[%c0_3, %c0_4] : memref<1x128xf32, #tpu.memory_space<vmem>>, vector<1x128xf32>
    %4 = vector.broadcast %3 : vector<1x128xf32> to vector<128x128xf32>
    %5 = arith.mulf %2, %4 : vector<128x128xf32>
    %c0_5 = arith.constant 0 : index
    %c0_6 = arith.constant 0 : index
    %6 = vector.load %arg5[%c0_5, %c0_6] : memref<1x128xf32, #tpu.memory_space<vmem>>, vector<1x128xf32>
    %7 = vector.broadcast %6 : vector<1x128xf32> to vector<128x128xf32>
    %8 = arith.addf %5, %7 : vector<128x128xf32>
    %cst_7 = arith.constant 0.000000e+00 : f32
    %9 = vector.broadcast %cst_7 : f32 to vector<128x128xf32>
    %10 = arith.maximumf %8, %9 : vector<128x128xf32>
    %11 = arith.truncf %10 : vector<128x128xf32> to vector<128x128xbf16>
    %c0_8 = arith.constant 0 : index
    %c0_9 = arith.constant 0 : index
    %12 = vector.load %arg6[%c0_8, %c0_9] : memref<128x128xbf16, #tpu.memory_space<vmem>>, vector<128x128xbf16>
    tpu.vector_store %arg6[%c0_8, %c0_9], %11 {strides = array<i32>} : memref<128x128xbf16, #tpu.memory_space<vmem>>, vector<128x128xbf16>,
    return
  }
  func.func @transform_0(%arg0: i32, %arg1: i32) -> (i32, i32) {
    %c0_i32 = arith.constant 0 : i32
    %c0_i32_0 = arith.constant 0 : i32
    return %arg0, %c0_i32 : i32, i32
  }
  func.func @transform_1(%arg0: i32, %arg1: i32) -> (i32, i32) {
    %c0_i32 = arith.constant 0 : i32
    %c0_i32_0 = arith.constant 0 : i32
    return %c0_i32, %arg1 : i32, i32
  }
  func.func @transform_2(%arg0: i32, %arg1: i32) -> (i32, i32) {
    %c0_i32 = arith.constant 0 : i32
    %c0_i32_0 = arith.constant 0 : i32
    return %c0_i32, %arg1 : i32, i32
  }
  func.func @transform_3(%arg0: i32, %arg1: i32) -> (i32, i32) {
    %c0_i32 = arith.constant 0 : i32
    %c0_i32_0 = arith.constant 0 : i32
    return %c0_i32, %arg1 : i32, i32
  }
  func.func @transform_4(%arg0: i32, %arg1: i32) -> (i32, i32) {
    %c0_i32 = arith.constant 0 : i32
    return %arg0, %arg1 : i32, i32
  }
}

</mosaic_0001>

<llo_original>
// kernel: tpu_custom_call.1
$region0: #{tpu_custom_call.1}
  #allocation0 [shape = 'u32[]', space=smem, size = 0x4, offset = 0x4, fixed_abs, tag = 'smem constant byte address 0x4 - core index']
  #allocation1 [shape = 'u32[144,128]{1,0:T(1,128)}', space=vmem, size = 0x12000, scoped, tag = 'internal scratch']
  %s0 = inlined_call_operand.hbm [shape: bf16[512,256], index: 0, kind: input, shape index: {}]
  %s1 = inlined_call_operand.hbm [shape: bf16[256,128], index: 1, kind: input, shape index: {}]
  %s2 = inlined_call_operand.vmem [shape: f32[1,128], index: 2, kind: input, shape index: {}]
  %s3 = inlined_call_operand.vmem [shape: f32[1,128], index: 3, kind: input, shape index: {}]
  %s4 = inlined_call_operand.hbm [shape: bf16[512,128], index: 4, kind: output, shape index: {}]
  %s5 = sld [smem:[#allocation0]]
  $region57: #{tpu_custom_call.1} parent=0
    _
  %s7 = ssub.s32 1, %s5
  %s8 = scalar_select 0, %s7, %s5
  $region1: #{tpu_custom_call.1} parent=0
    #allocation2 [shape = 'u8[131072]{0}', space=vmem, size = 0x20000, scoped, tag = 'input window, operand 0']
    #allocation3 [shape = 's32[2]{0}', space=sflag, size = 0x8, scoped, tag = 'scoped memory for tpu_custom_call.1']
    #allocation4 [shape = 's32[2]{0}', space=sflag, size = 0x8, scoped, tag = 'scoped memory for tpu_custom_call.1']
    #allocation5 [shape = 'u8[65536]{0}', space=vmem, size = 0x10000, scoped, tag = 'input window, operand 1, single buffered']
    #allocation6 [shape = 's32[1]{0}', space=sflag, size = 0x4, scoped, tag = 'scoped memory for tpu_custom_call.1']
    #allocation7 [shape = 'u8[65536]{0}', space=vmem, size = 0x10000, scoped, tag = 'output window, operand 0']
    %9 = vsyncpa [#allocation3], 0
    %s10 = scalar_lea.sflag [#allocation3], 1
    %11 = vsyncpa %s10, 0
    %12 = vsyncpa [#allocation6], 0
    %13 = vsyncpa [#allocation4], 0
    %s14 = scalar_lea.sflag [#allocation4], 1
    %15 = vsyncpa %s14, 0
    loop: start=0, step=1, limit=6
    $region2: #{tpu_custom_call.1} parent=1 // loop_pre_header
      _
    $region3: #{tpu_custom_call.1} parent=1 // loop_header
      %s17 = sphi 0, %s21
      %p18 = scmp.ge.s32.totalorder %s17, 6
      %s24 = sphi 0, %s36
      %s25 = sphi 0, %s32
      %s26 = sphi 0, %s24
      %s27 = sphi 0, %s25
      %s28 = sphi 0, %s26
      %s29 = sphi 0, %s27
      %s39 = sphi 0, %s41
      %s42 = sphi 0, %s39
      %s43 = sphi 0, %s42
      %s59 = sphi 0, %s43
      %s65 = sphi 0, %s67
      %s68 = sphi 0, %s65
      %s69 = sphi 0, %s68
      %s85 = sphi 0, %s69
      %s91 = sphi 0, %s93
      %s94 = sphi 0, %s91
      %s95 = sphi 0, %s94
      %s111 = sphi 0, %s95
      %s117 = sphi 0, %s119
      %s120 = sphi 0, %s117
      %s121 = sphi 0, %s120
      %s137 = sphi 0, %s121
      %s145 = sphi 0, %s147
      %s148 = sphi 0, %s145
      %s149 = sphi 0, %s148
      %s165 = sphi 0, %s149
    $region4: #{tpu_custom_call.1} parent=1 // loop_header_branch
      %20 = sbr.rel (%p18) target = $region8
    $region5: #{tpu_custom_call.1} parent=1 // loop_body
      %s22 = ssub.s32 %s17, 1
      %s23 = ssub.s32 %s17, 2
      %s30 = sadd.s32 1, %s25
      %p31 = scmp.ge.s32.totalorder %s30, 1
      %s32 = scalar_select %p31, 0, %s30
      %s33 = sadd.s32 1, %s24
      %s34 = scalar_select %p31, %s33, %s24
      %p35 = scmp.ge.s32.totalorder %s34, 4
      %s36 = scalar_select %p35, 0, %s34
      %s37 = ssub.s32 %s24, %s36
      %p38 = scmp.eq.s32.totalorder %s37, 0
      %s40 = sadd.s32 %s39, 1
      %s41 = scalar_select %p38, %s39, %s40
      %p44 = pneg %p38
      %p45 = scmp.eq.s32.totalorder %s17, 3
      %p46 = por %p44, %p45
      %p47 = scmp.ne.s32.totalorder %s39, %s42
      %p48 = scmp.eq.s32.totalorder %s17, 0
      %p49 = por %p47, %p48
      %p50 = scmp.ne.s32.totalorder %s39, %s42
      %p51 = scmp.eq.s32.totalorder %s22, 3
      %p52 = por %p50, %p51
      %p53 = scmp.ne.s32.totalorder %s42, %s43
      %p54 = scmp.eq.s32.totalorder %s22, 0
      %p55 = por %p53, %p54
      %p56 = scmp.ne.s32.totalorder %s42, %s43
      %p57 = scmp.eq.s32.totalorder %s23, 3
      %p58 = por %p56, %p57
      %p60 = scmp.ne.s32.totalorder %s43, %s59
      %p61 = scmp.eq.s32.totalorder %s23, 0
      %p62 = por %p60, %p61
      %s63 = ssub.s32 %s25, %s32
      %p64 = scmp.eq.s32.totalorder %s63, 0
      %s66 = sadd.s32 %s65, 1
      %s67 = scalar_select %p64, %s65, %s66
      %p70 = pneg %p64
      %p71 = scmp.eq.s32.totalorder %s17, 3
      %p72 = por %p70, %p71
      %p73 = scmp.ne.s32.totalorder %s65, %s68
      %p74 = scmp.eq.s32.totalorder %s17, 0
      %p75 = por %p73, %p74
      %p76 = scmp.ne.s32.totalorder %s65, %s68
      %p77 = scmp.eq.s32.totalorder %s22, 3
      %p78 = por %p76, %p77
      %p79 = scmp.ne.s32.totalorder %s68, %s69
      %p80 = scmp.eq.s32.totalorder %s22, 0
      %p81 = por %p79, %p80
      %p82 = scmp.ne.s32.totalorder %s68, %s69
      %p83 = scmp.eq.s32.totalorder %s23, 3
      %p84 = por %p82, %p83
      %p86 = scmp.ne.s32.totalorder %s69, %s85
      %p87 = scmp.eq.s32.totalorder %s23, 0
      %p88 = por %p86, %p87
      %s89 = ssub.s32 %s25, %s32
      %p90 = scmp.eq.s32.totalorder %s89, 0
      %s92 = sadd.s32 %s91, 1
      %s93 = scalar_select %p90, %s91, %s92
      %p96 = pneg %p90
      %p97 = scmp.eq.s32.totalorder %s17, 3
      %p98 = por %p96, %p97
      %p99 = scmp.ne.s32.totalorder %s91, %s94
      %p100 = scmp.eq.s32.totalorder %s17, 0
      %p101 = por %p99, %p100
      %p102 = scmp.ne.s32.totalorder %s91, %s94
      %p103 = scmp.eq.s32.totalorder %s22, 3
      %p104 = por %p102, %p103
      %p105 = scmp.ne.s32.totalorder %s94, %s95
      %p106 = scmp.eq.s32.totalorder %s22, 0
      %p107 = por %p105, %p106
      %p108 = scmp.ne.s32.totalorder %s94, %s95
      %p109 = scmp.eq.s32.totalorder %s23, 3
      %p110 = por %p108, %p109
      %p112 = scmp.ne.s32.totalorder %s95, %s111
      %p113 = scmp.eq.s32.totalorder %s23, 0
      %p114 = por %p112, %p113
      %s115 = ssub.s32 %s25, %s32
      %p116 = scmp.eq.s32.totalorder %s115, 0
      %s118 = sadd.s32 %s117, 1
      %s119 = scalar_select %p116, %s117, %s118
      %p122 = pneg %p116
      %p123 = scmp.eq.s32.totalorder %s17, 3
      %p124 = por %p122, %p123
      %p125 = scmp.ne.s32.totalorder %s117, %s120
      %p126 = scmp.eq.s32.totalorder %s17, 0
      %p127 = por %p125, %p126
      %p128 = scmp.ne.s32.totalorder %s117, %s120
      %p129 = scmp.eq.s32.totalorder %s22, 3
      %p130 = por %p128, %p129
      %p131 = scmp.ne.s32.totalorder %s120, %s121
      %p132 = scmp.eq.s32.totalorder %s22, 0
      %p133 = por %p131, %p132
      %p134 = scmp.ne.s32.totalorder %s120, %s121
      %p135 = scmp.eq.s32.totalorder %s23, 3
      %p136 = por %p134, %p135
      %p138 = scmp.ne.s32.totalorder %s121, %s137
      %p139 = scmp.eq.s32.totalorder %s23, 0
      %p140 = por %p138, %p139
      %s141 = ssub.s32 %s24, %s36
      %s142 = ssub.s32 %s25, %s32
      %s143 = sor.u32 %s141, %s142
      %p144 = scmp.eq.s32.totalorder %s143, 0
      %s146 = sadd.s32 %s145, 1
      %s147 = scalar_select %p144, %s145, %s146
      %p150 = pneg %p144
      %p151 = scmp.eq.s32.totalorder %s17, 3
      %p152 = por %p150, %p151
      %p153 = scmp.ne.s32.totalorder %s145, %s148
      %p154 = scmp.eq.s32.totalorder %s17, 0
      %p155 = por %p153, %p154
      %p156 = scmp.ne.s32.totalorder %s145, %s148
      %p157 = scmp.eq.s32.totalorder %s22, 3
      %p158 = por %p156, %p157
      %p159 = scmp.ne.s32.totalorder %s148, %s149
      %p160 = scmp.eq.s32.totalorder %s22, 0
      %p161 = por %p159, %p160
      %p162 = scmp.ne.s32.totalorder %s148, %s149
      %p163 = scmp.eq.s32.totalorder %s23, 3
      %p164 = por %p162, %p163
      %p166 = scmp.ne.s32.totalorder %s149, %s165
      %p167 = scmp.eq.s32.totalorder %s23, 0
      %p168 = por %p166, %p167
      %p169 = scmp.le.s32.totalorder 1, %s17
      %p170 = scmp.lt.s32.totalorder %s17, 5
      %p171 = pnand %p169, %p170
      %p172 = pneg %p171
      // Predicated region
      $region9: #{tpu_custom_call.1} parent=5 // pred_check
        _
      $region10: #{tpu_custom_call.1} parent=5 // pred_check_branch
        %174 = sbr.rel (%p171) target = $region12
      $region11: #{tpu_custom_call.1} parent=5 // pred_region
        %s175 = ssub.s32 %s17, 1
        // Predicated region
        $region13: #{tpu_custom_call.1} parent=11 // pred_check
          %p176 = pneg %p81
        $region14: #{tpu_custom_call.1} parent=11 // pred_check_branch
          %178 = sbr.rel (%p176) target = $region16
        $region15: #{tpu_custom_call.1} parent=11 // pred_region
          %s180 = ssub.s32 2048, 2048
          %181 = vsyncadd [#allocation6], %s180
          %s182 = smul.addr %s27, 64
          %s183 = scalar_lea.hbm %s1, %s182
          %s184 = sshll.u32 [#allocation5], 4
          %s185 = int_to_ptr.vmem [resolvable:$true] %s184
          %190 = dma.hbm_to_vmem [thread:$0]  %s183, 2048, %s185, [#allocation6], 64, 64, 4
        $region16: #{tpu_custom_call.1} parent=11 // pred_fallthru
          _
        // Predicated region
        $region17: #{tpu_custom_call.1} parent=11 // pred_check
          %p191 = pneg %p107
        $region18: #{tpu_custom_call.1} parent=11 // pred_check_branch
          %193 = sbr.rel (%p191) target = $region20
        $region19: #{tpu_custom_call.1} parent=11 // pred_region
          %p194 = scmp.lt.s32.totalorder %s27, 0
          %s195 = scalar_select %p194, %s27, 0
          %s196 = scalar_lea.vmem %s2, %s195
        $region20: #{tpu_custom_call.1} parent=11 // pred_fallthru
          _
        // Predicated region
        $region21: #{tpu_custom_call.1} parent=11 // pred_check
          %p197 = pneg %p133
        $region22: #{tpu_custom_call.1} parent=11 // pred_check_branch
          %199 = sbr.rel (%p197) target = $region24
        $region23: #{tpu_custom_call.1} parent=11 // pred_region
          %p200 = scmp.lt.s32.totalorder %s27, 0
          %s201 = scalar_select %p200, %s27, 0
          %s202 = scalar_lea.vmem %s3, %s201
        $region24: #{tpu_custom_call.1} parent=11 // pred_fallthru
          _
      $region12: #{tpu_custom_call.1} parent=5 // pred_fallthru
        _
      %p203 = scmp.lt.s32.totalorder %s17, 4
      // Predicated region
      $region25: #{tpu_custom_call.1} parent=5 // pred_check
        %p204 = pneg %p203
      $region26: #{tpu_custom_call.1} parent=5 // pred_check_branch
        %206 = sbr.rel (%p204) target = $region28
      $region27: #{tpu_custom_call.1} parent=5 // pred_region
        // Predicated region
        $region29: #{tpu_custom_call.1} parent=27 // pred_check
          %p207 = pneg %p49
        $region30: #{tpu_custom_call.1} parent=27 // pred_check_branch
          %209 = sbr.rel (%p207) target = $region32
        $region31: #{tpu_custom_call.1} parent=27 // pred_region
          %s210 = sand.u32 %s39, 1
          %s211 = scalar_lea.sflag [#allocation3], %s210
          %s212 = sand.u32 %s39, 1
          %s213 = smul.addr %s212, 128
          %s214 = scalar_lea.vmem [#allocation2], %s213
          %s215 = smul.u32 16, %s24
          %s217 = ssub.s32 2048, 2048
          %218 = vsyncadd %s211, %s217
          %s219 = smul.addr %s215, 2
          %s220 = smul.addr %s219, 64
          %s221 = scalar_lea.hbm %s0, %s220
          %s222 = sshll.u32 %s214, 4
          %s223 = int_to_ptr.vmem [resolvable:$true] %s222
          %228 = dma.hbm_to_vmem [thread:$0]  %s221, 2048, %s223, %s211, 128, 128, 8
        $region32: #{tpu_custom_call.1} parent=27 // pred_fallthru
          _
      $region28: #{tpu_custom_call.1} parent=5 // pred_fallthru
        _
      %p229 = scmp.le.s32.totalorder 1, %s17
      %p230 = scmp.lt.s32.totalorder %s17, 5
      %p231 = pnand %p229, %p230
      %p232 = pneg %p231
      // Predicated region
      $region33: #{tpu_custom_call.1} parent=5 // pred_check
        _
      $region34: #{tpu_custom_call.1} parent=5 // pred_check_branch
        %234 = sbr.rel (%p231) target = $region36
      $region35: #{tpu_custom_call.1} parent=5 // pred_region
        %s235 = ssub.s32 %s17, 1
        %s236 = sand.u32 %s42, 1
        %s237 = scalar_lea.sflag [#allocation3], %s236
        %s238 = sand.u32 %s42, 1
        %s239 = smul.addr %s238, 128
        %s240 = scalar_lea.vmem [#allocation2], %s239
        // Predicated region
        $region37: #{tpu_custom_call.1} parent=35 // pred_check
          %p241 = pneg %p55
        $region38: #{tpu_custom_call.1} parent=35 // pred_check_branch
          %243 = sbr.rel (%p241) target = $region40
        $region39: #{tpu_custom_call.1} parent=35 // pred_region
          %244 = dma.done %s237, 2048
        $region40: #{tpu_custom_call.1} parent=35 // pred_fallthru
          _
        // Predicated region
        $region41: #{tpu_custom_call.1} parent=35 // pred_check
          %p245 = pneg %p81
        $region42: #{tpu_custom_call.1} parent=35 // pred_check_branch
          %247 = sbr.rel (%p245) target = $region44
        $region43: #{tpu_custom_call.1} parent=35 // pred_region
          %248 = dma.done [#allocation6], 2048
        $region44: #{tpu_custom_call.1} parent=35 // pred_fallthru
          _
        %s249 = sand.u32 %s42, 1
        %s250 = scalar_lea.sflag [#allocation3], %s249
        %s251 = sand.u32 %s42, 1
        %s252 = smul.addr %s251, 128
        %s253 = scalar_lea.vmem [#allocation2], %s252
        %p254 = pneg %p55
        %p255 = pneg %p52
        %p256 = pneg %p81
        %p257 = pneg %p78
        %p258 = scmp.lt.s32.totalorder %s27, 0
        %s259 = scalar_select %p258, %s27, 0
        %s260 = scalar_lea.vmem %s2, %s259
        %p261 = pneg %p107
        %p262 = pneg %p104
        %p263 = scmp.lt.s32.totalorder %s27, 0
        %s264 = scalar_select %p263, %s27, 0
        %s265 = scalar_lea.vmem %s3, %s264
        %p266 = pneg %p133
        %p267 = pneg %p130
        %p268 = pneg %p161
        %p269 = pneg %p158
        %s270 = sand.u32 %s148, 1
        %s271 = scalar_lea.sflag [#allocation4], %s270
        %s272 = sand.u32 %s148, 1
        %s273 = smul.addr %s272, 64
        %s274 = scalar_lea.vmem [#allocation7], %s273
        %s275 = smul.u32 16, %s26
        %p276 = scmp.lt.s32.totalorder %s27, 0
        %s277 = scalar_select %p276, %s27, 0
        %s278 = scalar_lea.vmem %s2, %s277
        %p279 = scmp.lt.s32.totalorder %s27, 0
        %s280 = scalar_select %p279, %s27, 0
        %s281 = scalar_lea.vmem %s3, %s280
        %s282 = smul.u32 16, %s26
        %v284 = vld [vmem:[%s240] sm:$0xff]
        %v285 = vld [vmem:[%s240 + $0x8] sm:$0xff]
        %v286 = vld [vmem:[%s240 + $0x10] sm:$0xff]
        %v287 = vld [vmem:[%s240 + $0x18] sm:$0xff]
        %v288 = vld [vmem:[%s240 + $0x20] sm:$0xff]
        %v289 = vld [vmem:[%s240 + $0x28] sm:$0xff]
        %v290 = vld [vmem:[%s240 + $0x30] sm:$0xff]
        %v291 = vld [vmem:[%s240 + $0x38] sm:$0xff]
        %v292 = vld [vmem:[%s240 + $0x40] sm:$0xff]
        %v293 = vld [vmem:[%s240 + $0x48] sm:$0xff]
        %v294 = vld [vmem:[%s240 + $0x50] sm:$0xff]
        %v295 = vld [vmem:[%s240 + $0x58] sm:$0xff]
        %v296 = vld [vmem:[%s240 + $0x60] sm:$0xff]
        %v297 = vld [vmem:[%s240 + $0x68] sm:$0xff]
        %v298 = vld [vmem:[%s240 + $0x70] sm:$0xff]
        %v299 = vld [vmem:[%s240 + $0x78] sm:$0xff]
        %v300 = vld [vmem:[#allocation5] sm:$0xf]
        %v301 = vld [vmem:[#allocation5 + $0x4] sm:$0xf]
        %v302 = vld [vmem:[#allocation5 + $0x8] sm:$0xf]
        %v303 = vld [vmem:[#allocation5 + $0xc] sm:$0xf]
        %v304 = vld [vmem:[#allocation5 + $0x10] sm:$0xf]
        %v305 = vld [vmem:[#allocation5 + $0x14] sm:$0xf]
        %v306 = vld [vmem:[#allocation5 + $0x18] sm:$0xf]
        %v307 = vld [vmem:[#allocation5 + $0x1c] sm:$0xf]
        %v308 = vld [vmem:[#allocation5 + $0x20] sm:$0xf]
        %v309 = vld [vmem:[#allocation5 + $0x24] sm:$0xf]
        %v310 = vld [vmem:[#allocation5 + $0x28] sm:$0xf]
        %v311 = vld [vmem:[#allocation5 + $0x2c] sm:$0xf]
        %v312 = vld [vmem:[#allocation5 + $0x30] sm:$0xf]
        %v313 = vld [vmem:[#allocation5 + $0x34] sm:$0xf]
        %v314 = vld [vmem:[#allocation5 + $0x38] sm:$0xf]
        %v315 = vld [vmem:[#allocation5 + $0x3c] sm:$0xf]
        %v316 = vld [vmem:[#allocation5 + $0x40] sm:$0xf]
        %v317 = vld [vmem:[#allocation5 + $0x44] sm:$0xf]
        %v318 = vld [vmem:[#allocation5 + $0x48] sm:$0xf]
        %v319 = vld [vmem:[#allocation5 + $0x4c] sm:$0xf]
        %v320 = vld [vmem:[#allocation5 + $0x50] sm:$0xf]
        %v321 = vld [vmem:[#allocation5 + $0x54] sm:$0xf]
        %v322 = vld [vmem:[#allocation5 + $0x58] sm:$0xf]
        %v323 = vld [vmem:[#allocation5 + $0x5c] sm:$0xf]
        %v324 = vld [vmem:[#allocation5 + $0x60] sm:$0xf]
        %v325 = vld [vmem:[#allocation5 + $0x64] sm:$0xf]
        %v326 = vld [vmem:[#allocation5 + $0x68] sm:$0xf]
        %v327 = vld [vmem:[#allocation5 + $0x6c] sm:$0xf]
        %v328 = vld [vmem:[#allocation5 + $0x70] sm:$0xf]
        %v329 = vld [vmem:[#allocation5 + $0x74] sm:$0xf]
        %v330 = vld [vmem:[#allocation5 + $0x78] sm:$0xf]
        %v331 = vld [vmem:[#allocation5 + $0x7c] sm:$0xf]
        %v348 = vunpack.c.l.b16 %v284
        %v349 = vunpack.c.h.b16 %v284
        %v350 = vunpack.c.l.b16 %v285
        %v351 = vunpack.c.h.b16 %v285
        %v352 = vunpack.c.l.b16 %v286
        %v353 = vunpack.c.h.b16 %v286
        %v354 = vunpack.c.l.b16 %v287
        %v355 = vunpack.c.h.b16 %v287
        %v356 = vunpack.c.l.b16 %v288
        %v357 = vunpack.c.h.b16 %v288
        %v358 = vunpack.c.l.b16 %v289
        %v359 = vunpack.c.h.b16 %v289
        %v360 = vunpack.c.l.b16 %v290
        %v361 = vunpack.c.h.b16 %v290
        %v362 = vunpack.c.l.b16 %v291
        %v363 = vunpack.c.h.b16 %v291
        %v364 = vunpack.c.l.b16 %v292
        %v365 = vunpack.c.h.b16 %v292
        %v366 = vunpack.c.l.b16 %v293
        %v367 = vunpack.c.h.b16 %v293
        %v368 = vunpack.c.l.b16 %v294
        %v369 = vunpack.c.h.b16 %v294
        %v370 = vunpack.c.l.b16 %v295
        %v371 = vunpack.c.h.b16 %v295
        %v372 = vunpack.c.l.b16 %v296
        %v373 = vunpack.c.h.b16 %v296
        %v374 = vunpack.c.l.b16 %v297
        %v375 = vunpack.c.h.b16 %v297
        %v376 = vunpack.c.l.b16 %v298
        %v377 = vunpack.c.h.b16 %v298
        %v378 = vunpack.c.l.b16 %v299
        %v379 = vunpack.c.h.b16 %v299
        %v380 = vpack.c.b16 %v350, %v348
        %v381 = vpack.c.b16 %v351, %v349
        %v382 = vpack.c.b16 %v354, %v352
        %v383 = vpack.c.b16 %v355, %v353
        %v384 = vpack.c.b16 %v358, %v356
        %v385 = vpack.c.b16 %v359, %v357
        %v386 = vpack.c.b16 %v362, %v360
        %v387 = vpack.c.b16 %v363, %v361
        %v388 = vpack.c.b16 %v366, %v364
        %v389 = vpack.c.b16 %v367, %v365
        %v390 = vpack.c.b16 %v370, %v368
        %v391 = vpack.c.b16 %v371, %v369
        %v392 = vpack.c.b16 %v374, %v372
        %v393 = vpack.c.b16 %v375, %v373
        %v394 = vpack.c.b16 %v378, %v376
        %v395 = vpack.c.b16 %v379, %v377
        %v444 = vunpack.c.l.b16 %v300
        %v445 = vunpack.c.l.b16 %v301
        %v446 = vunpack.c.l.b16 %v302
        %v447 = vunpack.c.l.b16 %v303
        %v448 = vunpack.c.l.b16 %v304
        %v449 = vunpack.c.l.b16 %v305
        %v450 = vunpack.c.l.b16 %v306
        %v451 = vunpack.c.l.b16 %v307
        %v452 = vunpack.c.l.b16 %v308
        %v453 = vunpack.c.l.b16 %v309
        %v454 = vunpack.c.l.b16 %v310
        %v455 = vunpack.c.l.b16 %v311
        %v456 = vunpack.c.l.b16 %v312
        %v457 = vunpack.c.l.b16 %v313
        %v458 = vunpack.c.l.b16 %v314
        %v459 = vunpack.c.l.b16 %v315
        %v460 = vunpack.c.l.b16 %v316
        %v461 = vunpack.c.l.b16 %v317
        %v462 = vunpack.c.l.b16 %v318
        %v463 = vunpack.c.l.b16 %v319
        %v464 = vunpack.c.l.b16 %v320
        %v465 = vunpack.c.l.b16 %v321
        %v466 = vunpack.c.l.b16 %v322
        %v467 = vunpack.c.l.b16 %v323
        %v468 = vunpack.c.l.b16 %v324
        %v469 = vunpack.c.l.b16 %v325
        %v470 = vunpack.c.l.b16 %v326
        %v471 = vunpack.c.l.b16 %v327
        %v472 = vunpack.c.l.b16 %v328
        %v473 = vunpack.c.l.b16 %v329
        %v474 = vunpack.c.l.b16 %v330
        %v475 = vunpack.c.l.b16 %v331
        %v476 = vpack.c.b16 %v445, %v444
        %v477 = vpack.c.b16 %v447, %v446
        %v478 = vpack.c.b16 %v449, %v448
        %v479 = vpack.c.b16 %v451, %v450
        %v480 = vpack.c.b16 %v453, %v452
        %v481 = vpack.c.b16 %v455, %v454
        %v482 = vpack.c.b16 %v457, %v456
        %v483 = vpack.c.b16 %v459, %v458
        %v484 = vpack.c.b16 %v461, %v460
        %v485 = vpack.c.b16 %v463, %v462
        %v486 = vpack.c.b16 %v465, %v464
        %v487 = vpack.c.b16 %v467, %v466
        %v488 = vpack.c.b16 %v469, %v468
        %v489 = vpack.c.b16 %v471, %v470
        %v490 = vpack.c.b16 %v473, %v472
        %v491 = vpack.c.b16 %v475, %v474
        %508 = vmatprep.subr.bf16.mxu0 0
        %509 = vmatpush1.bf16.msra.mxu0 %v476
        %510 = vmatprep.subr.bf16.mxu0 0
        %511 = vmatpush1.bf16.msra.mxu0 %v477
        %512 = vmatprep.subr.bf16.mxu0 0
        %513 = vmatpush1.bf16.msra.mxu0 %v478
        %514 = vmatprep.subr.bf16.mxu0 0
        %515 = vmatpush1.bf16.msra.mxu0 %v479
        %516 = vmatprep.subr.bf16.mxu0 0
        %517 = vmatpush1.bf16.msra.mxu0 %v480
        %518 = vmatprep.subr.bf16.mxu0 0
        %519 = vmatpush1.bf16.msra.mxu0 %v481
        %520 = vmatprep.subr.bf16.mxu0 0
        %521 = vmatpush1.bf16.msra.mxu0 %v482
        %522 = vmatprep.subr.bf16.mxu0 0
        %523 = vmatpush1.bf16.msra.mxu0 %v483
        %524 = vmatprep.subr.bf16.mxu0 0
        %525 = vmatpush1.bf16.msra.mxu0 %v484
        %526 = vmatprep.subr.bf16.mxu0 0
        %527 = vmatpush1.bf16.msra.mxu0 %v485
        %528 = vmatprep.subr.bf16.mxu0 0
        %529 = vmatpush1.bf16.msra.mxu0 %v486
        %530 = vmatprep.subr.bf16.mxu0 0
        %531 = vmatpush1.bf16.msra.mxu0 %v487
        %532 = vmatprep.subr.bf16.mxu0 0
        %533 = vmatpush1.bf16.msra.mxu0 %v488
        %534 = vmatprep.subr.bf16.mxu0 0
        %535 = vmatpush1.bf16.msra.mxu0 %v489
        %536 = vmatprep.subr.bf16.mxu0 0
        %537 = vmatpush1.bf16.msra.mxu0 %v490
        %538 = vmatprep.subr.bf16.mxu0 0
        %539 = vmatpush1.bf16.msra.mxu0 %v491
        %540 = vmatprep.mubr.bf16.mxu0 %v381
        %541 = vmatmul.mubr.bf16.gmra.mrb[0].mxu0 %v380
        %v542 = vpop.f32.mrb[0].mxu0
        %v543 = vadd.f32 0.0, %v542
        %v544 = vpop.f32.mrb[0].mxu0
        %v545 = vpop.f32.mrb[0].mxu0
        %v546 = vadd.f32 0.0, %v545
        %v547 = vpop.f32.mrb[0].mxu0
        %548 = vmatprep.mubr.bf16.mxu0 %v383
        %549 = vmatmul.mubr.bf16.gmra.mrb[0].mxu0 %v382
        %v550 = vpop.f32.mrb[0].mxu0
        %v551 = vadd.f32 0.0, %v550
        %v552 = vpop.f32.mrb[0].mxu0
        %v553 = vpop.f32.mrb[0].mxu0
        %v554 = vadd.f32 0.0, %v553
        %v555 = vpop.f32.mrb[0].mxu0
        %556 = vmatprep.mubr.bf16.mxu0 %v385
        %557 = vmatmul.mubr.bf16.gmra.mrb[0].mxu0 %v384
        %v558 = vpop.f32.mrb[0].mxu0
        %v559 = vadd.f32 0.0, %v558
        %v560 = vpop.f32.mrb[0].mxu0
        %v561 = vpop.f32.mrb[0].mxu0
        %v562 = vadd.f32 0.0, %v561
        %v563 = vpop.f32.mrb[0].mxu0
        %564 = vmatprep.mubr.bf16.mxu0 %v387
        %565 = vmatmul.mubr.bf16.gmra.mrb[0].mxu0 %v386
        %v566 = vpop.f32.mrb[0].mxu0
        %v567 = vadd.f32 0.0, %v566
        %v568 = vpop.f32.mrb[0].mxu0
        %v569 = vpop.f32.mrb[0].mxu0
        %v570 = vadd.f32 0.0, %v569
        %v571 = vpop.f32.mrb[0].mxu0
        %572 = vmatprep.mubr.bf16.mxu0 %v389
        %573 = vmatmul.mubr.bf16.gmra.mrb[0].mxu0 %v388
        %v574 = vpop.f32.mrb[0].mxu0
        %v575 = vadd.f32 0.0, %v574
        %v576 = vpop.f32.mrb[0].mxu0
        %v577 = vpop.f32.mrb[0].mxu0
        %v578 = vadd.f32 0.0, %v577
        %v579 = vpop.f32.mrb[0].mxu0
        %580 = vmatprep.mubr.bf16.mxu0 %v391
        %581 = vmatmul.mubr.bf16.gmra.mrb[0].mxu0 %v390
        %v582 = vpop.f32.mrb[0].mxu0
        %v583 = vadd.f32 0.0, %v582
        %v584 = vpop.f32.mrb[0].mxu0
        %v585 = vpop.f32.mrb[0].mxu0
        %v586 = vadd.f32 0.0, %v585
        %v587 = vpop.f32.mrb[0].mxu0
        %588 = vmatprep.mubr.bf16.mxu0 %v393
        %589 = vmatmul.mubr.bf16.gmra.mrb[0].mxu0 %v392
        %v590 = vpop.f32.mrb[0].mxu0
        %v591 = vadd.f32 0.0, %v590
        %v592 = vpop.f32.mrb[0].mxu0
        %v593 = vpop.f32.mrb[0].mxu0
        %v594 = vadd.f32 0.0, %v593
        %v595 = vpop.f32.mrb[0].mxu0
        %596 = vmatprep.mubr.bf16.mxu0 %v395
        %597 = vmatmul.mubr.bf16.gmra.mrb[0].mxu0 %v394
        %v598 = vpop.f32.mrb[0].mxu0
        %v599 = vadd.f32 0.0, %v598
        %v600 = vpop.f32.mrb[0].mxu0
        %v601 = vpop.f32.mrb[0].mxu0
        %v602 = vadd.f32 0.0, %v601
        %v603 = vpop.f32.mrb[0].mxu0
        %604 = vdwg.mxu0
        %v605 = vld [vmem:[%s278] sm:$0x1]
        %v607 = vlaneseq
        %v608 = vshrl.u32 %v607, 7
        %v609 = vsub.s32 0, %v608
        %v610 = vrot.slane %v605, %v609
        %v612 = vmul.f32 %v543, %v610
        %v613 = vmul.f32 %v546, %v610
        %v614 = vmul.f32 %v551, %v610
        %v615 = vmul.f32 %v554, %v610
        %v616 = vmul.f32 %v559, %v610
        %v617 = vmul.f32 %v562, %v610
        %v618 = vmul.f32 %v567, %v610
        %v619 = vmul.f32 %v570, %v610
        %v620 = vmul.f32 %v575, %v610
        %v621 = vmul.f32 %v578, %v610
        %v622 = vmul.f32 %v583, %v610
        %v623 = vmul.f32 %v586, %v610
        %v624 = vmul.f32 %v591, %v610
        %v625 = vmul.f32 %v594, %v610
        %v626 = vmul.f32 %v599, %v610
        %v627 = vmul.f32 %v602, %v610
        %v628 = vld [vmem:[%s281] sm:$0x1]
        %v630 = vlaneseq
        %v631 = vshrl.u32 %v630, 7
        %v632 = vsub.s32 0, %v631
        %v633 = vrot.slane %v628, %v632
        %v635 = vadd.f32 %v612, %v633
        %v636 = vadd.f32 %v613, %v633
        %v637 = vadd.f32 %v614, %v633
        %v638 = vadd.f32 %v615, %v633
        %v639 = vadd.f32 %v616, %v633
        %v640 = vadd.f32 %v617, %v633
        %v641 = vadd.f32 %v618, %v633
        %v642 = vadd.f32 %v619, %v633
        %v643 = vadd.f32 %v620, %v633
        %v644 = vadd.f32 %v621, %v633
        %v645 = vadd.f32 %v622, %v633
        %v646 = vadd.f32 %v623, %v633
        %v647 = vadd.f32 %v624, %v633
        %v648 = vadd.f32 %v625, %v633
        %v649 = vadd.f32 %v626, %v633
        %v650 = vadd.f32 %v627, %v633
        %v651 = vmax.f32 %v635, 0.0
        %v652 = vmax.f32 %v636, 0.0
        %v653 = vmax.f32 %v637, 0.0
        %v654 = vmax.f32 %v638, 0.0
        %v655 = vmax.f32 %v639, 0.0
        %v656 = vmax.f32 %v640, 0.0
        %v657 = vmax.f32 %v641, 0.0
        %v658 = vmax.f32 %v642, 0.0
        %v659 = vmax.f32 %v643, 0.0
        %v660 = vmax.f32 %v644, 0.0
        %v661 = vmax.f32 %v645, 0.0
        %v662 = vmax.f32 %v646, 0.0
        %v663 = vmax.f32 %v647, 0.0
        %v664 = vmax.f32 %v648, 0.0
        %v665 = vmax.f32 %v649, 0.0
        %v666 = vmax.f32 %v650, 0.0
        %v667 = vpack.c.bf16 %v652, %v651
        %v668 = vpack.c.bf16 %v654, %v653
        %v669 = vpack.c.bf16 %v656, %v655
        %v670 = vpack.c.bf16 %v658, %v657
        %v671 = vpack.c.bf16 %v660, %v659
        %v672 = vpack.c.bf16 %v662, %v661
        %v673 = vpack.c.bf16 %v664, %v663
        %v674 = vpack.c.bf16 %v666, %v665
        %v683 = vunpack.c.l.b16 %v667
        %v684 = vunpack.c.h.b16 %v667
        %v685 = vunpack.c.l.b16 %v668
        %v686 = vunpack.c.h.b16 %v668
        %v687 = vunpack.c.l.b16 %v669
        %v688 = vunpack.c.h.b16 %v669
        %v689 = vunpack.c.l.b16 %v670
        %v690 = vunpack.c.h.b16 %v670
        %v691 = vunpack.c.l.b16 %v671
        %v692 = vunpack.c.h.b16 %v671
        %v693 = vunpack.c.l.b16 %v672
        %v694 = vunpack.c.h.b16 %v672
        %v695 = vunpack.c.l.b16 %v673
        %v696 = vunpack.c.h.b16 %v673
        %v697 = vunpack.c.l.b16 %v674
        %v698 = vunpack.c.h.b16 %v674
        %v699 = vpack.c.b16 %v683, %v683
        %v700 = vpack.c.b16 %v684, %v684
        %v701 = vpack.c.b16 %v685, %v685
        %v702 = vpack.c.b16 %v686, %v686
        %v703 = vpack.c.b16 %v687, %v687
        %v704 = vpack.c.b16 %v688, %v688
        %v705 = vpack.c.b16 %v689, %v689
        %v706 = vpack.c.b16 %v690, %v690
        %v707 = vpack.c.b16 %v691, %v691
        %v708 = vpack.c.b16 %v692, %v692
        %v709 = vpack.c.b16 %v693, %v693
        %v710 = vpack.c.b16 %v694, %v694
        %v711 = vpack.c.b16 %v695, %v695
        %v712 = vpack.c.b16 %v696, %v696
        %v713 = vpack.c.b16 %v697, %v697
        %v714 = vpack.c.b16 %v698, %v698
        %731 = vst [vmem:[%s274] sm:$0xf] %v699
        %732 = vst [vmem:[%s274 + $0x4] sm:$0xf] %v700
        %733 = vst [vmem:[%s274 + $0x8] sm:$0xf] %v701
        %734 = vst [vmem:[%s274 + $0xc] sm:$0xf] %v702
        %735 = vst [vmem:[%s274 + $0x10] sm:$0xf] %v703
        %736 = vst [vmem:[%s274 + $0x14] sm:$0xf] %v704
        %737 = vst [vmem:[%s274 + $0x18] sm:$0xf] %v705
        %738 = vst [vmem:[%s274 + $0x1c] sm:$0xf] %v706
        %739 = vst [vmem:[%s274 + $0x20] sm:$0xf] %v707
        %740 = vst [vmem:[%s274 + $0x24] sm:$0xf] %v708
        %741 = vst [vmem:[%s274 + $0x28] sm:$0xf] %v709
        %742 = vst [vmem:[%s274 + $0x2c] sm:$0xf] %v710
        %743 = vst [vmem:[%s274 + $0x30] sm:$0xf] %v711
        %744 = vst [vmem:[%s274 + $0x34] sm:$0xf] %v712
        %745 = vst [vmem:[%s274 + $0x38] sm:$0xf] %v713
        %746 = vst [vmem:[%s274 + $0x3c] sm:$0xf] %v714
        %s747 = sand.u32 %s148, 1
        %s748 = scalar_lea.sflag [#allocation4], %s747
        %s749 = sand.u32 %s148, 1
        %s750 = smul.addr %s749, 64
        %s751 = scalar_lea.vmem [#allocation7], %s750
        // Predicated region
        $region45: #{tpu_custom_call.1} parent=35 // pred_check
          %p752 = pneg %p158
        $region46: #{tpu_custom_call.1} parent=35 // pred_check_branch
          %754 = sbr.rel (%p752) target = $region48
        $region47: #{tpu_custom_call.1} parent=35 // pred_region
          %s755 = smul.u32 16, %s26
          %s757 = ssub.s32 1024, 1024
          %758 = vsyncadd %s748, %s757
          %s759 = sadd.s32 %s27, %s755
          %s760 = smul.addr %s759, 64
          %s761 = scalar_lea.hbm %s4, %s760
          %s762 = sshll.u32 %s751, 4
          %s763 = int_to_ptr.vmem [resolvable:$true] %s762
          %768 = dma.vmem_to_hbm [thread:$0]  %s763, 1024, %s761, %s748, 64, 64, 4
        $region48: #{tpu_custom_call.1} parent=35 // pred_fallthru
          _
      $region36: #{tpu_custom_call.1} parent=5 // pred_fallthru
        _
      %p769 = scmp.le.s32.totalorder 2, %s17
      // Predicated region
      $region49: #{tpu_custom_call.1} parent=5 // pred_check
        %p770 = pneg %p769
      $region50: #{tpu_custom_call.1} parent=5 // pred_check_branch
        %772 = sbr.rel (%p770) target = $region52
      $region51: #{tpu_custom_call.1} parent=5 // pred_region
        %s773 = ssub.s32 %s17, 2
        // Predicated region
        $region53: #{tpu_custom_call.1} parent=51 // pred_check
          %p774 = pneg %p164
        $region54: #{tpu_custom_call.1} parent=51 // pred_check_branch
          %776 = sbr.rel (%p774) target = $region56
        $region55: #{tpu_custom_call.1} parent=51 // pred_region
          %s777 = sand.u32 %s149, 1
          %s778 = scalar_lea.sflag [#allocation4], %s777
          %s779 = sand.u32 %s149, 1
          %s780 = smul.addr %s779, 64
          %s781 = scalar_lea.vmem [#allocation7], %s780
          %782 = dma.done %s778, 1024
        $region56: #{tpu_custom_call.1} parent=51 // pred_fallthru
          _
      $region52: #{tpu_custom_call.1} parent=5 // pred_fallthru
        _
    $region6: #{tpu_custom_call.1} parent=1 // loop_footer
      %s21 = sadd.s32 1, %s17
    $region7: #{tpu_custom_call.1} parent=1 // loop_footer_branch
      %16 = sbr.rel target = $region3
    $region8: #{tpu_custom_call.1} parent=1 // loop_exit
      _
    %783 = vsyncpa [#allocation3], 1
    %s784 = scalar_lea.sflag [#allocation3], 1
    %785 = vsyncpa %s784, 1
    %786 = vsyncpa [#allocation6], 1
    %787 = vsyncpa [#allocation4], 1
    %s788 = scalar_lea.sflag [#allocation4], 1
    %789 = vsyncpa %s788, 1

</llo_original>
